<compile_context>
chip_gen: v6e
topology: v6e:2x2x1
jax: 0.10.0
libtpu: 0.0.40
codegen_flags: <defaults>
</compile_context>

<pallas_src>
import functools
import math

import jax
import jax.numpy as jnp
from jax.experimental import pallas as pl
from jax.experimental.pallas import tpu as pltpu


def _patch_embed_kernel(xp_ref, w_ref, add_ref, o_ref):
    # xp_ref : (TM, P)      bf16 patch rows; TB groups of (N+1) rows, row 0 of
    #                       each group is all-zero (the CLS slot).
    # w_ref  : (P, D_pad)   bf16 projection weight, pre-transposed, resident.
    # add_ref: (TM, D_pad)  bf16 additive rows: row 0 of each group is
    #                       cls + pos[0], rows 1..N are bias + pos[1:].
    # o_ref  : (TM, D_pad)  output rows — already the final token layout.
    proj = jnp.dot(xp_ref[...], w_ref[...],
                   preferred_element_type=jnp.float32)           # MXU, f32 acc
    o_ref[...] = (proj + add_ref[...].astype(jnp.float32)).astype(o_ref.dtype)


def _vmem_capacity_bytes():
    try:
        return int(pltpu.get_tpu_info().vmem_capacity_bytes)
    except Exception:
        return 64 << 20          # conservative fallback (v7x per-TC VMEM)


def patch_embedding(x, w, b, cls_token, pos_embedding, patch_size,
                    *, out_dtype=None, target_rows=1536):
    """ViT patch embedding forward.

    x: (B, C, H, W) f32, w: (D, P) Linear weight, b: (D,), cls_token: (1,1,D),
    pos_embedding: (1, N+1, D).  Returns (B, N+1, D).
    Set out_dtype=jnp.bfloat16 to cut the output HBM writeback when the rest
    of the model runs bf16.
    """
    B, C, H, W = x.shape
    p = patch_size
    h, w_ = H // p, W // p
    N = h * w_
    Np1 = N + 1
    P = p * p * C
    D = pos_embedding.shape[-1]
    D_pad = ((D + 127) // 128) * 128                 # lane-dense output width
    out_dtype = x.dtype if out_dtype is None else jnp.dtype(out_dtype)
    out_bytes = jnp.dtype(out_dtype).itemsize

    # ---- tiling: TB batch elements per grid step, TM = TB*(N+1) rows -------
    step = 8 // math.gcd(Np1, 8)                     # smallest TB with TM%8==0

    # Per-row VMEM bytes: patches (bf16, double-buffered) + add tile (bf16,
    # single-buffered) + output (double-buffered).  Weight is resident.
    bytes_per_row = 2 * (P * 2) + (D_pad * 2) + 2 * (D_pad * out_bytes)
    weight_bytes = P * D_pad * 2
    vmem_cap = _vmem_capacity_bytes()
    budget = min(vmem_cap // 2, 48 << 20)            # ~48 MiB v5e/v6e, 32 MiB v7x
    max_tm = max(step * Np1, (budget - weight_bytes) // bytes_per_row)

    tb_vmem = max(step, ((max_tm // Np1) // step) * step)
    tb_tgt = max(step, ((target_rows // Np1) // step) * step)
    tb_cover = ((B + step - 1) // step) * step       # whole batch in one step
    TB = max(step, min(tb_vmem, tb_tgt, tb_cover))
    # Keep >= 2 grid steps whenever the batch can be split: required to feed
    # both TensorCores on v7x; costs one ~0.35us step elsewhere (negligible).
    if B >= 2 * step:
        TB = min(TB, ((B - 1) // step) * step)
    TM = TB * Np1
    B_pad = ((B + TB - 1) // TB) * TB

    # ---- glue: Rearrange 'b c (h p1) (w p2) -> b (h w) (p1 p2 c)', then ----
    # prepend one zero row per batch element (CLS slot) and pad the batch.
    patches = x.reshape(B, C, h, p, w_, p).transpose(0, 2, 4, 3, 5, 1)
    patches = patches.reshape(B, N, P)
    patches = jnp.pad(patches, ((0, B_pad - B), (1, 0), (0, 0)))  # (B_pad,N+1,P)
    patches_flat = patches.reshape(B_pad * Np1, P).astype(jnp.bfloat16)

    # ---- weight: (D, P) -> pad D, transpose to (P, D_pad), bf16 ------------
    w_pad = w if D_pad == D else jnp.pad(w, ((0, D_pad - D), (0, 0)))
    w_t = w_pad.T.astype(jnp.bfloat16)                            # (P, D_pad)

    # ---- additive rows: row 0 = cls + pos[0]; rows 1..N = bias + pos[1:] ---
    pos = pos_embedding.reshape(Np1, D).astype(jnp.float32)
    add = jnp.concatenate(
        [cls_token.reshape(1, D).astype(jnp.float32) + pos[:1],
         pos[1:] + b.reshape(1, D).astype(jnp.float32)], axis=0)  # (N+1, D)
    if D_pad != D:
        add = jnp.pad(add, ((0, 0), (0, D_pad - D)))
    add_tile = jnp.tile(add, (TB, 1)).astype(jnp.bfloat16)        # (TM, D_pad)

    working_set = weight_bytes + TM * bytes_per_row
    vmem_limit = int(min(vmem_cap - (8 << 20),
                         max(working_set + (8 << 20), 32 << 20)))

    grid = (B_pad // TB,)

    def _call(single_buffer_resident):
        resident_kw = (dict(pipeline_mode=pl.Buffered(1))
                       if single_buffer_resident else {})
        return pl.pallas_call(
            _patch_embed_kernel,
            out_shape=jax.ShapeDtypeStruct((B_pad * Np1, D_pad), out_dtype),
            grid_spec=pltpu.PrefetchScalarGridSpec(
                num_scalar_prefetch=0,
                grid=grid,
                in_specs=[
                    # streaming patch rows: default double-buffered pipeline
                    pl.BlockSpec((TM, P), lambda i: (i, 0)),
                    # grid-invariant operands: single-buffered (save VMEM)
                    pl.BlockSpec((P, D_pad), lambda i: (0, 0), **resident_kw),
                    pl.BlockSpec((TM, D_pad), lambda i: (0, 0), **resident_kw),
                ],
                out_specs=pl.BlockSpec((TM, D_pad), lambda i: (i, 0)),
            ),
            compiler_params=pltpu.CompilerParams(
                dimension_semantics=("parallel",),
                vmem_limit_bytes=vmem_limit,
            ),
        )(patches_flat, w_t, add_tile)

    try:
        out_flat = _call(True)
    except Exception:
        # Fallback for jax versions without pipeline_mode support on the TPU
        # pallas_call pipeline: default double-buffering (correct, more VMEM).
        out_flat = _call(False)

    tokens = out_flat.reshape(B_pad, Np1, D_pad)
    if B_pad != B or D_pad != D:
        tokens = tokens[:B, :, :D]
    return tokens


def reference(x, w, b, cls_token, pos_embedding, patch_size):
    B, C, H, W = x.shape
    p = patch_size
    h, w_ = H // p, W // p
    patches = x.reshape(B, C, h, p, w_, p).transpose(0, 2, 4, 3, 5, 1)
    patches = patches.reshape(B, h * w_, p * p * C)
    proj = patches @ w.T + b
    cls = jnp.broadcast_to(cls_token, (B, 1, w.shape[0]))
    tok = jnp.concatenate([cls, proj], axis=1)
    return tok + pos_embedding


if __name__ == "__main__":
    image_size = 16
    patch_size = 4
    in_channels = 4
    embed_dim = 32
    B = 2
    num_patches = (image_size // patch_size) ** 2          # 16
    patch_dim = patch_size * patch_size * in_channels      # 64

    key = jax.random.PRNGKey(0)
    kx, kw, kb, kc, kp = jax.random.split(key, 5)
    x = jax.random.normal(kx, (B, in_channels, image_size, image_size),
                          dtype=jnp.float32)
    # Linear weight: (embed_dim, patch_dim), bias: (embed_dim,)
    w = jax.random.normal(kw, (embed_dim, patch_dim), jnp.float32) * 0.02
    b = jax.random.normal(kb, (embed_dim,), jnp.float32) * 0.02
    cls_token = jax.random.normal(kc, (1, 1, embed_dim), jnp.float32)
    pos_embedding = jax.random.normal(kp, (1, num_patches + 1, embed_dim),
                                      jnp.float32)

    fn = jax.jit(functools.partial(patch_embedding, patch_size=patch_size))
    out = jax.block_until_ready(fn(x, w, b, cls_token, pos_embedding))

    ref = reference(x, w, b, cls_token, pos_embedding, patch_size)
    assert out.shape == (B, num_patches + 1, embed_dim)
    assert out.dtype == ref.dtype
    # bf16 MXU operands + bf16 additive tile (f32 accumulation) -> loose tol.
    assert jnp.allclose(out, ref, atol=2e-2, rtol=2e-2)
    print("KERNEL_OK")
</pallas_src>

<mosaic_0001>
module attributes {stable_mosaic.version = 11 : i64} {
  func.func @_patch_embed_kernel(%arg0: i32, %arg1: memref<136x64xbf16, #tpu.memory_space<vmem>>, %arg2: memref<64x128xbf16, #tpu.memory_space<vmem>>, %arg3: memref<136x128xbf16, #tpu.memory_space<vmem>>, %arg4: memref<136x128xf32, #tpu.memory_space<vmem>>) attributes {dimension_semantics = [#tpu.dimension_semantics<parallel>], iteration_bounds = array<i64: 1>, scalar_prefetch = 0 : i64, scratch_operands = 0 : i64, tpu.core_type = #tpu.core_type<tc>, window_params = [{transform_indices = @transform_0, window_bounds = array<i64: 136, 64>}, {pipeline_mode = #tpu.pipeline_mode<synchronous>, transform_indices = @transform_1, window_bounds = array<i64: 64, 128>}, {pipeline_mode = #tpu.pipeline_mode<synchronous>, transform_indices = @transform_2, window_bounds = array<i64: 136, 128>}, {transform_indices = @transform_3, window_bounds = array<i64: 136, 128>}]} {
    %c0 = arith.constant 0 : index
    %c0_0 = arith.constant 0 : index
    %0 = vector.load %arg1[%c0, %c0_0] : memref<136x64xbf16, #tpu.memory_space<vmem>>, vector<136x64xbf16>
    %c0_1 = arith.constant 0 : index
    %c0_2 = arith.constant 0 : index
    %1 = vector.load %arg2[%c0_1, %c0_2] : memref<64x128xbf16, #tpu.memory_space<vmem>>, vector<64x128xbf16>
    %cst = arith.constant dense<0.000000e+00> : vector<136x128xf32>
    %2 = tpu.matmul %0, %1, %cst {dimension_numbers = #tpu.dot_dimension_numbers<[1], [0], [0], [1], [0, 0, 1, 1], [], []>} : vector<136x64xbf16>, vector<64x128xbf16>, vector<136x128xf32> -> vector<136x128xf32>
    %c0_3 = arith.constant 0 : index
    %c0_4 = arith.constant 0 : index
    %3 = vector.load %arg3[%c0_3, %c0_4] : memref<136x128xbf16, #tpu.memory_space<vmem>>, vector<136x128xbf16>
    %4 = arith.extf %3 : vector<136x128xbf16> to vector<136x128xf32>
    %5 = arith.addf %2, %4 : vector<136x128xf32>
    %c0_5 = arith.constant 0 : index
    %c0_6 = arith.constant 0 : index
    %6 = vector.load %arg4[%c0_5, %c0_6] : memref<136x128xf32, #tpu.memory_space<vmem>>, vector<136x128xf32>
    tpu.vector_store %arg4[%c0_5, %c0_6], %5 {strides = array<i32>} : memref<136x128xf32, #tpu.memory_space<vmem>>, vector<136x128xf32>,
    return
  }
  func.func @transform_0(%arg0: i32) -> (i32, i32) {
    %c0_i32 = arith.constant 0 : i32
    %c0_i32_0 = arith.constant 0 : i32
    return %arg0, %c0_i32 : i32, i32
  }
  func.func @transform_1(%arg0: i32) -> (i32, i32) {
    %c0_i32 = arith.constant 0 : i32
    %c0_i32_0 = arith.constant 0 : i32
    %c0_i32_1 = arith.constant 0 : i32
    return %c0_i32, %c0_i32_0 : i32, i32
  }
  func.func @transform_2(%arg0: i32) -> (i32, i32) {
    %c0_i32 = arith.constant 0 : i32
    %c0_i32_0 = arith.constant 0 : i32
    %c0_i32_1 = arith.constant 0 : i32
    return %c0_i32, %c0_i32_0 : i32, i32
  }
  func.func @transform_3(%arg0: i32) -> (i32, i32) {
    %c0_i32 = arith.constant 0 : i32
    %c0_i32_0 = arith.constant 0 : i32
    return %arg0, %c0_i32 : i32, i32
  }
}

</mosaic_0001>

<llo_original>
// kernel: patch_embedding.1
$region0: #{patch_embedding.1}
  #allocation0 [shape = 'u32[]', space=smem, size = 0x4, offset = 0x4, fixed_abs, tag = 'smem constant byte address 0x4 - core index']
  #allocation1 [shape = 'u32[144,128]{1,0:T(1,128)}', space=vmem, size = 0x12000, scoped, tag = 'internal scratch']
  %s0 = inlined_call_operand.vmem [shape: bf16[136,64], index: 0, kind: input, shape index: {}]
  %s1 = inlined_call_operand.vmem [shape: bf16[64,128], index: 1, kind: input, shape index: {}]
  %s2 = inlined_call_operand.vmem [shape: bf16[136,128], index: 2, kind: input, shape index: {}]
  %s3 = inlined_call_operand.vmem [shape: f32[136,128], index: 3, kind: output, shape index: {}]
  %s4 = sld [smem:[#allocation0]]
  $region22: #{patch_embedding.1} parent=0
    _
  %s6 = ssub.s32 1, %s4
  %s7 = scalar_select 0, %s6, %s4
  // Predicated region
  $region2: #{patch_embedding.1} parent=0 // pred_check
    _
  $region3: #{patch_embedding.1} parent=0 // pred_check_branch
    %9 = sbr.rel (0) target = $region5
  $region4: #{patch_embedding.1} parent=0 // pred_region
    _
  $region5: #{patch_embedding.1} parent=0 // pred_fallthru
    _
  // Predicated region
  $region6: #{patch_embedding.1} parent=0 // pred_check
    _
  $region7: #{patch_embedding.1} parent=0 // pred_check_branch
    %11 = sbr.rel (0) target = $region9
  $region8: #{patch_embedding.1} parent=0 // pred_region
    _
  $region9: #{patch_embedding.1} parent=0 // pred_fallthru
    _
  // Predicated region
  $region10: #{patch_embedding.1} parent=0 // pred_check
    _
  $region11: #{patch_embedding.1} parent=0 // pred_check_branch
    %13 = sbr.rel (0) target = $region13
  $region12: #{patch_embedding.1} parent=0 // pred_region
    _
  $region13: #{patch_embedding.1} parent=0 // pred_fallthru
    _
  %v15 = vld [vmem:[%s0] sm:$0xf]
  %v16 = vld [vmem:[%s0 + $0x4] sm:$0xf]
  %v17 = vld [vmem:[%s0 + $0x8] sm:$0xf]
  %v18 = vld [vmem:[%s0 + $0xc] sm:$0xf]
  %v19 = vld [vmem:[%s0 + $0x10] sm:$0xf]
  %v20 = vld [vmem:[%s0 + $0x14] sm:$0xf]
  %v21 = vld [vmem:[%s0 + $0x18] sm:$0xf]
  %v22 = vld [vmem:[%s0 + $0x1c] sm:$0xf]
  %v23 = vld [vmem:[%s0 + $0x20] sm:$0xf]
  %v24 = vld [vmem:[%s0 + $0x24] sm:$0xf]
  %v25 = vld [vmem:[%s0 + $0x28] sm:$0xf]
  %v26 = vld [vmem:[%s0 + $0x2c] sm:$0xf]
  %v27 = vld [vmem:[%s0 + $0x30] sm:$0xf]
  %v28 = vld [vmem:[%s0 + $0x34] sm:$0xf]
  %v29 = vld [vmem:[%s0 + $0x38] sm:$0xf]
  %v30 = vld [vmem:[%s0 + $0x3c] sm:$0xf]
  %v31 = vld [vmem:[%s0 + $0x40] sm:$0xf]
  %v32 = vld [vmem:[%s1] sm:$0xf]
  %v33 = vld [vmem:[%s1 + $0x4] sm:$0xf]
  %v34 = vld [vmem:[%s1 + $0x8] sm:$0xf]
  %v35 = vld [vmem:[%s1 + $0xc] sm:$0xf]
  %v36 = vld [vmem:[%s1 + $0x10] sm:$0xf]
  %v37 = vld [vmem:[%s1 + $0x14] sm:$0xf]
  %v38 = vld [vmem:[%s1 + $0x18] sm:$0xf]
  %v39 = vld [vmem:[%s1 + $0x1c] sm:$0xf]
  %v40 = vld [vmem:[%s2] sm:$0xf]
  %v41 = vld [vmem:[%s2 + $0x4] sm:$0xf]
  %v42 = vld [vmem:[%s2 + $0x8] sm:$0xf]
  %v43 = vld [vmem:[%s2 + $0xc] sm:$0xf]
  %v44 = vld [vmem:[%s2 + $0x10] sm:$0xf]
  %v45 = vld [vmem:[%s2 + $0x14] sm:$0xf]
  %v46 = vld [vmem:[%s2 + $0x18] sm:$0xf]
  %v47 = vld [vmem:[%s2 + $0x1c] sm:$0xf]
  %v48 = vld [vmem:[%s2 + $0x20] sm:$0xf]
  %v49 = vld [vmem:[%s2 + $0x24] sm:$0xf]
  %v50 = vld [vmem:[%s2 + $0x28] sm:$0xf]
  %v51 = vld [vmem:[%s2 + $0x2c] sm:$0xf]
  %v52 = vld [vmem:[%s2 + $0x30] sm:$0xf]
  %v53 = vld [vmem:[%s2 + $0x34] sm:$0xf]
  %v54 = vld [vmem:[%s2 + $0x38] sm:$0xf]
  %v55 = vld [vmem:[%s2 + $0x3c] sm:$0xf]
  %v56 = vld [vmem:[%s2 + $0x40] sm:$0xf]
  %v57 = vunpack.c.l.bf16 %v40
  %v58 = vunpack.c.l.bf16 %v41
  %v59 = vunpack.c.l.bf16 %v42
  %v60 = vunpack.c.l.bf16 %v43
  %v61 = vunpack.c.l.bf16 %v44
  %v62 = vunpack.c.l.bf16 %v45
  %v63 = vunpack.c.l.bf16 %v46
  %v64 = vunpack.c.l.bf16 %v47
  %v65 = vunpack.c.l.bf16 %v48
  %v66 = vunpack.c.l.bf16 %v49
  %v67 = vunpack.c.l.bf16 %v50
  %v68 = vunpack.c.l.bf16 %v51
  %v69 = vunpack.c.l.bf16 %v52
  %v70 = vunpack.c.l.bf16 %v53
  %v71 = vunpack.c.l.bf16 %v54
  %v72 = vunpack.c.l.bf16 %v55
  %v73 = vunpack.c.l.bf16 %v56
  %v91 = vunpack.c.l.b16 %v15
  %v92 = vunpack.c.l.b16 %v16
  %v93 = vunpack.c.l.b16 %v17
  %v94 = vunpack.c.l.b16 %v18
  %v95 = vunpack.c.l.b16 %v19
  %v96 = vunpack.c.l.b16 %v20
  %v97 = vunpack.c.l.b16 %v21
  %v98 = vunpack.c.l.b16 %v22
  %v99 = vunpack.c.l.b16 %v23
  %v100 = vunpack.c.l.b16 %v24
  %v101 = vunpack.c.l.b16 %v25
  %v102 = vunpack.c.l.b16 %v26
  %v103 = vunpack.c.l.b16 %v27
  %v104 = vunpack.c.l.b16 %v28
  %v105 = vunpack.c.l.b16 %v29
  %v106 = vunpack.c.l.b16 %v30
  %v107 = vunpack.c.l.b16 %v31
  %v108 = vpack.c.b16 %v92, %v91
  %v109 = vpack.c.b16 %v94, %v93
  %v110 = vpack.c.b16 %v96, %v95
  %v111 = vpack.c.b16 %v98, %v97
  %v112 = vpack.c.b16 %v100, %v99
  %v113 = vpack.c.b16 %v102, %v101
  %v114 = vpack.c.b16 %v104, %v103
  %v115 = vpack.c.b16 %v106, %v105
  %v116 = vpack.c.b16 %v107, %v107
  %v125 = vunpack.c.l.b16 %v32
  %v126 = vunpack.c.l.b16 %v33
  %v127 = vunpack.c.l.b16 %v34
  %v128 = vunpack.c.l.b16 %v35
  %v129 = vunpack.c.l.b16 %v36
  %v130 = vunpack.c.l.b16 %v37
  %v131 = vunpack.c.l.b16 %v38
  %v132 = vunpack.c.l.b16 %v39
  %v133 = vpack.c.b16 %v126, %v125
  %v134 = vpack.c.b16 %v128, %v127
  %v135 = vpack.c.b16 %v130, %v129
  %v136 = vpack.c.b16 %v132, %v131
  %vm141 = vcmask 523264
  %v143 = vsel %vm141, %v108, 0
  %v146 = vsel %vm141, %v109, 0
  %v149 = vsel %vm141, %v110, 0
  %v152 = vsel %vm141, %v111, 0
  %v155 = vsel %vm141, %v112, 0
  %v158 = vsel %vm141, %v113, 0
  %v161 = vsel %vm141, %v114, 0
  %v164 = vsel %vm141, %v115, 0
  %v167 = vsel %vm141, %v116, 0
  %169 = vmatprep.subr.bf16.mxu0 0
  %170 = vmatpush1.bf16.msra.mxu0 0
  %171 = vmatprep.subr.bf16.mxu0 0
  %172 = vmatpush1.bf16.msra.mxu0 0
  %173 = vmatprep.subr.bf16.mxu0 0
  %174 = vmatpush1.bf16.msra.mxu0 0
  %175 = vmatprep.subr.bf16.mxu0 0
  %176 = vmatpush1.bf16.msra.mxu0 0
  %177 = vmatprep.subr.bf16.mxu0 0
  %178 = vmatpush1.bf16.msra.mxu0 %v136
  %179 = vmatprep.subr.bf16.mxu0 0
  %180 = vmatpush1.bf16.msra.mxu0 %v135
  %181 = vmatprep.subr.bf16.mxu0 0
  %182 = vmatpush1.bf16.msra.mxu0 %v134
  %183 = vmatprep.subr.bf16.mxu0 0
  %184 = vmatpush1.bf16.msra.mxu0 %v133
  %185 = vmatprep.subr.bf16.mxu0 0
  %186 = vmatpush2.bf16.msra.mxu0 0
  %187 = vmatprep.subr.bf16.mxu0 0
  %188 = vmatpush2.bf16.msra.mxu0 0
  %189 = vmatprep.subr.bf16.mxu0 0
  %190 = vmatpush2.bf16.msra.mxu0 0
  %191 = vmatprep.subr.bf16.mxu0 0
  %192 = vmatpush2.bf16.msra.mxu0 0
  %193 = vmatprep.subr.bf16.mxu0 0
  %194 = vmatpush2.bf16.msra.mxu0 0
  %195 = vmatprep.subr.bf16.mxu0 0
  %196 = vmatpush2.bf16.msra.mxu0 0
  %197 = vmatprep.subr.bf16.mxu0 0
  %198 = vmatpush2.bf16.msra.mxu0 0
  %199 = vmatprep.subr.bf16.mxu0 0
  %200 = vmatpush2.bf16.msra.mxu0 0
  %201 = vmatprep.mubr.bf16.mxu0 0
  %202 = vmatmul.mubr.bf16.gmra.mxu0 %v143
  %v203 = vpop.f32.mrf.mxu0
  %v204 = vadd.f32 %v57, %v203
  %v205 = vpop.f32.mrf.mxu0
  %v206 = vpop.f32.mrf.mxu0
  %v207 = vadd.f32 %v58, %v206
  %v208 = vpop.f32.mrf.mxu0
  %209 = vmatprep.mubr.bf16.mxu0 0
  %210 = vmatmul.mubr.bf16.gmra.mxu0 %v146
  %v211 = vpop.f32.mrf.mxu0
  %v212 = vadd.f32 %v59, %v211
  %v213 = vpop.f32.mrf.mxu0
  %v214 = vpop.f32.mrf.mxu0
  %v215 = vadd.f32 %v60, %v214
  %v216 = vpop.f32.mrf.mxu0
  %217 = vmatprep.mubr.bf16.mxu0 0
  %218 = vmatmul.mubr.bf16.gmra.mxu0 %v149
  %v219 = vpop.f32.mrf.mxu0
  %v220 = vadd.f32 %v61, %v219
  %v221 = vpop.f32.mrf.mxu0
  %v222 = vpop.f32.mrf.mxu0
  %v223 = vadd.f32 %v62, %v222
  %v224 = vpop.f32.mrf.mxu0
  %225 = vmatprep.mubr.bf16.mxu0 0
  %226 = vmatmul.mubr.bf16.gmra.mxu0 %v152
  %v227 = vpop.f32.mrf.mxu0
  %v228 = vadd.f32 %v63, %v227
  %v229 = vpop.f32.mrf.mxu0
  %v230 = vpop.f32.mrf.mxu0
  %v231 = vadd.f32 %v64, %v230
  %v232 = vpop.f32.mrf.mxu0
  %233 = vmatprep.mubr.bf16.mxu0 0
  %234 = vmatmul.mubr.bf16.gmra.mxu0 %v155
  %v235 = vpop.f32.mrf.mxu0
  %v236 = vadd.f32 %v65, %v235
  %v237 = vpop.f32.mrf.mxu0
  %v238 = vpop.f32.mrf.mxu0
  %v239 = vadd.f32 %v66, %v238
  %v240 = vpop.f32.mrf.mxu0
  %241 = vmatprep.mubr.bf16.mxu0 0
  %242 = vmatmul.mubr.bf16.gmra.mxu0 %v158
  %v243 = vpop.f32.mrf.mxu0
  %v244 = vadd.f32 %v67, %v243
  %v245 = vpop.f32.mrf.mxu0
  %v246 = vpop.f32.mrf.mxu0
  %v247 = vadd.f32 %v68, %v246
  %v248 = vpop.f32.mrf.mxu0
  %249 = vmatprep.mubr.bf16.mxu0 0
  %250 = vmatmul.mubr.bf16.gmra.mxu0 %v161
  %v251 = vpop.f32.mrf.mxu0
  %v252 = vadd.f32 %v69, %v251
  %v253 = vpop.f32.mrf.mxu0
  %v254 = vpop.f32.mrf.mxu0
  %v255 = vadd.f32 %v70, %v254
  %v256 = vpop.f32.mrf.mxu0
  %257 = vmatprep.mubr.bf16.mxu0 0
  %258 = vmatmul.mubr.bf16.gmra.mxu0 %v164
  %v259 = vpop.f32.mrf.mxu0
  %v260 = vadd.f32 %v71, %v259
  %v261 = vpop.f32.mrf.mxu0
  %v262 = vpop.f32.mrf.mxu0
  %v263 = vadd.f32 %v72, %v262
  %v264 = vpop.f32.mrf.mxu0
  %265 = vmatprep.mubr.bf16.mxu0 0
  %266 = vmatmul.mubr.bf16.gmra.mxu0 %v167
  %v267 = vpop.f32.mrf.mxu0
  %v268 = vadd.f32 %v73, %v267
  %v269 = vpop.f32.mrf.mxu0
  %v270 = vpop.f32.mrf.mxu0
  %v271 = vpop.f32.mrf.mxu0
  %272 = vdwg.mxu0
  %273 = vst [vmem:[%s3] sm:$0xff] %v204
  %274 = vst [vmem:[%s3 + $0x8] sm:$0xff] %v207
  %275 = vst [vmem:[%s3 + $0x10] sm:$0xff] %v212
  %276 = vst [vmem:[%s3 + $0x18] sm:$0xff] %v215
  %277 = vst [vmem:[%s3 + $0x20] sm:$0xff] %v220
  %278 = vst [vmem:[%s3 + $0x28] sm:$0xff] %v223
  %279 = vst [vmem:[%s3 + $0x30] sm:$0xff] %v228
  %280 = vst [vmem:[%s3 + $0x38] sm:$0xff] %v231
  %281 = vst [vmem:[%s3 + $0x40] sm:$0xff] %v236
  %282 = vst [vmem:[%s3 + $0x48] sm:$0xff] %v239
  %283 = vst [vmem:[%s3 + $0x50] sm:$0xff] %v244
  %284 = vst [vmem:[%s3 + $0x58] sm:$0xff] %v247
  %285 = vst [vmem:[%s3 + $0x60] sm:$0xff] %v252
  %286 = vst [vmem:[%s3 + $0x68] sm:$0xff] %v255
  %287 = vst [vmem:[%s3 + $0x70] sm:$0xff] %v260
  %288 = vst [vmem:[%s3 + $0x78] sm:$0xff] %v263
  %289 = vst [vmem:[%s3 + $0x80] sm:$0xff] %v268
  // Predicated region
  $region14: #{patch_embedding.1} parent=0 // pred_check
    _
  $region15: #{patch_embedding.1} parent=0 // pred_check_branch
    %291 = sbr.rel (0) target = $region17
  $region16: #{patch_embedding.1} parent=0 // pred_region
    _
  $region17: #{patch_embedding.1} parent=0 // pred_fallthru
    _
  // Predicated region
  $region18: #{patch_embedding.1} parent=0 // pred_check
    _
  $region19: #{patch_embedding.1} parent=0 // pred_check_branch
    %293 = sbr.rel (0) target = $region21
  $region20: #{patch_embedding.1} parent=0 // pred_region
    _
  $region21: #{patch_embedding.1} parent=0 // pred_fallthru
    _

</llo_original>
